<compile_context>
chip_gen: v5e
topology: v5e:2x2
jax: 0.10.0
libtpu: 0.0.40
codegen_flags: <defaults>
</compile_context>

<pallas_src>
import jax
import jax.numpy as jnp
from jax.experimental import pallas as pl
from jax.experimental.pallas import tpu as pltpu


def _add_kernel(a_ref, b_ref, o_ref):
    # Elementwise hot path: one VPU add per tile; HBM<->VMEM DMA is
    # double-buffered by the BlockSpec pipeline.
    o_ref[...] = a_ref[...] + b_ref[...]


def _sublane_multiple(dtype) -> int:
    # Minimum sublane packing multiple: f32 -> 8, bf16 -> 16, int8/fp8 -> 32.
    bits = jnp.dtype(dtype).itemsize * 8
    return max(8, 256 // bits)


def _choose_tiling(total: int, dtype):
    """Pick (lanes, tile_rows) for a lane-dense [rows, lanes] view."""
    itemsize = jnp.dtype(dtype).itemsize
    sub = _sublane_multiple(dtype)

    # Lane width: widest multiple of 128 (up to 1024) that doesn't force
    # excessive masking/tail work for small inputs.
    lanes = 1024
    while lanes > 128 and total < lanes * sub:
        lanes //= 2

    rows = pl.cdiv(total, lanes)
    rows_rounded = pl.cdiv(rows, sub) * sub

    # ~4 MiB per block buffer: amortizes the ~0.35 us per-grid-step overhead
    # while keeping the double-buffered working set (3 x 2 x 4 MiB = 24 MiB)
    # within the v7x 64 MiB-per-TC VMEM as well as v5e/v6e.
    target_rows = max(sub, (4 << 20) // (lanes * itemsize))
    tile_rows = min(target_rows, rows_rounded)
    tile_rows = pl.cdiv(tile_rows, sub) * sub

    # Guarantee >= 2 grid steps when possible so the "parallel" axis can be
    # sharded across both TensorCores on v7x (neutral on single-TC v5e/v6e).
    if tile_rows >= rows_rounded and rows_rounded >= 2 * sub:
        tile_rows = pl.cdiv(rows_rounded // 2, sub) * sub

    return lanes, tile_rows


def _pallas_add_2d(x2, y2, tile_rows, lanes):
    """Tiled, pipelined elementwise add over a lane-dense [rows, lanes] slab."""
    rows = x2.shape[0]
    itemsize = jnp.dtype(x2.dtype).itemsize
    total = rows * lanes
    grid = (pl.cdiv(rows, tile_rows),)  # uneven final block is masked by Pallas

    return pl.pallas_call(
        _add_kernel,
        out_shape=jax.ShapeDtypeStruct((rows, lanes), x2.dtype),
        grid=grid,
        in_specs=[
            pl.BlockSpec((tile_rows, lanes), lambda i: (i, 0)),
            pl.BlockSpec((tile_rows, lanes), lambda i: (i, 0)),
        ],
        out_specs=pl.BlockSpec((tile_rows, lanes), lambda i: (i, 0)),
        compiler_params=pltpu.CompilerParams(
            # Independent tiles -> parallel (lets megacore parts shard the
            # stream; neutral on single-TC chips).
            dimension_semantics=("parallel",),
            # 48 MiB scoped VMEM: headroom over the 24 MiB working set, still
            # under the v7x 64 MiB-per-TC physical limit.
            vmem_limit_bytes=48 * 1024 * 1024,
        ),
        cost_estimate=pl.CostEstimate(
            flops=total,
            transcendentals=0,
            bytes_accessed=3 * total * itemsize,
        ),
    )(x2, y2)


def model3_add(x, y):
    """Model3(Add()).forward(x, y) — elementwise add, same semantics as torch.add."""
    assert x.shape == y.shape and x.dtype == y.dtype
    orig_shape = x.shape
    total = int(x.size)

    lanes, tile_rows = _choose_tiling(total, x.dtype)

    xf = x.reshape(-1)
    yf = y.reshape(-1)

    main_rows = total // lanes
    main_total = main_rows * lanes

    if main_total == total:
        # Zero-copy path: flat reshape is a bitcast; any uneven final
        # row-block is handled by Pallas boundary masking (no jnp.pad).
        out2 = _pallas_add_2d(
            xf.reshape(main_rows, lanes),
            yf.reshape(main_rows, lanes),
            tile_rows, lanes,
        )
        return out2.reshape(orig_shape)

    if main_rows == 0:
        # Smaller than a single lane-row: a standalone custom call can't beat
        # the fused XLA elementwise op; just add directly.
        return x + y

    # Ragged path: Pallas over the lane-divisible prefix, plain XLA add for
    # the (< lanes element) tail — avoids full-array padding copies.
    out_main = _pallas_add_2d(
        xf[:main_total].reshape(main_rows, lanes),
        yf[:main_total].reshape(main_rows, lanes),
        tile_rows, lanes,
    )
    out_tail = xf[main_total:] + yf[main_total:]
    return jnp.concatenate([out_main.reshape(-1), out_tail]).reshape(orig_shape)


if __name__ == "__main__":
    key = jax.random.PRNGKey(0)
    k1, k2 = jax.random.split(key)
    # NCHW inputs, small shapes: batch=2, channels=4, spatial=16x16
    x = jax.random.normal(k1, (2, 4, 16, 16), dtype=jnp.float32)
    y = jax.random.normal(k2, (2, 4, 16, 16), dtype=jnp.float32)

    out = model3_add(x, y)
    jax.block_until_ready(out)

    # Correctness check against the plain-JAX reference (== torch.add semantics).
    ref = x + y
    assert out.shape == (2, 4, 16, 16)
    assert jnp.allclose(out, ref, atol=1e-6, rtol=1e-6)

    # Shape whose element count is NOT a multiple of 128 (exercises the
    # ragged prefix + XLA-tail path).
    k3, k4 = jax.random.split(k2)
    a = jax.random.normal(k3, (3, 5, 7, 9), dtype=jnp.float32)   # 945 elements
    b = jax.random.normal(k4, (3, 5, 7, 9), dtype=jnp.float32)
    out_odd = model3_add(a, b)
    jax.block_until_ready(out_odd)
    assert jnp.allclose(out_odd, a + b, atol=1e-6, rtol=1e-6)

    # Larger shape (exercises the multi-step, double-buffered pipeline and the
    # >= 2 grid-step guarantee: 2048 rows x 1024 lanes, 4 MiB blocks, grid=2).
    k5, k6 = jax.random.split(k4)
    big_x = jax.random.normal(k5, (8, 32, 64, 64), dtype=jnp.float32)  # 2M elems
    big_y = jax.random.normal(k6, (8, 32, 64, 64), dtype=jnp.float32)
    out_big = model3_add(big_x, big_y)
    jax.block_until_ready(out_big)
    assert jnp.allclose(out_big, big_x + big_y, atol=1e-6, rtol=1e-6)

    print("KERNEL_OK")
</pallas_src>

<mosaic_0001>
module attributes {stable_mosaic.version = 11 : i64} {
  func.func @_add_kernel(%arg0: i32, %arg1: memref<8x256xf32, #tpu.memory_space<vmem>>, %arg2: memref<8x256xf32, #tpu.memory_space<vmem>>, %arg3: memref<8x256xf32, #tpu.memory_space<vmem>>) attributes {dimension_semantics = [#tpu.dimension_semantics<parallel>], iteration_bounds = array<i64: 1>, scalar_prefetch = 0 : i64, scratch_operands = 0 : i64, tpu.core_type = #tpu.core_type<tc>, window_params = [{transform_indices = @transform_0, window_bounds = array<i64: 8, 256>}, {transform_indices = @transform_1, window_bounds = array<i64: 8, 256>}, {transform_indices = @transform_2, window_bounds = array<i64: 8, 256>}]} {
    %c0 = arith.constant 0 : index
    %c0_0 = arith.constant 0 : index
    %0 = vector.load %arg1[%c0, %c0_0] : memref<8x256xf32, #tpu.memory_space<vmem>>, vector<8x256xf32>
    %c0_1 = arith.constant 0 : index
    %c0_2 = arith.constant 0 : index
    %1 = vector.load %arg2[%c0_1, %c0_2] : memref<8x256xf32, #tpu.memory_space<vmem>>, vector<8x256xf32>
    %2 = arith.addf %0, %1 : vector<8x256xf32>
    %c0_3 = arith.constant 0 : index
    %c0_4 = arith.constant 0 : index
    %3 = vector.load %arg3[%c0_3, %c0_4] : memref<8x256xf32, #tpu.memory_space<vmem>>, vector<8x256xf32>
    tpu.vector_store %arg3[%c0_3, %c0_4], %2 {strides = array<i32>} : memref<8x256xf32, #tpu.memory_space<vmem>>, vector<8x256xf32>,
    return
  }
  func.func @transform_0(%arg0: i32) -> (i32, i32) {
    %c0_i32 = arith.constant 0 : i32
    %c0_i32_0 = arith.constant 0 : i32
    return %arg0, %c0_i32 : i32, i32
  }
  func.func @transform_1(%arg0: i32) -> (i32, i32) {
    %c0_i32 = arith.constant 0 : i32
    %c0_i32_0 = arith.constant 0 : i32
    return %arg0, %c0_i32 : i32, i32
  }
  func.func @transform_2(%arg0: i32) -> (i32, i32) {
    %c0_i32 = arith.constant 0 : i32
    %c0_i32_0 = arith.constant 0 : i32
    return %arg0, %c0_i32 : i32, i32
  }
}

</mosaic_0001>

<llo_original>
// kernel: tpu_custom_call.1
$region0: #{tpu_custom_call.1}
  #allocation0 [shape = 'u32[]', space=smem, size = 0x4, offset = 0x4, fixed_abs, tag = 'smem constant byte address 0x4 - core index']
  #allocation1 [shape = 'u32[72,128]{1,0:T(1,128)}', space=vmem, size = 0x9000, scoped, tag = 'internal scratch']
  %s0 = inlined_call_operand.hbm [shape: f32[8,256], index: 0, kind: input, shape index: {}]
  %s1 = inlined_call_operand.hbm [shape: f32[8,256], index: 1, kind: input, shape index: {}]
  %s2 = inlined_call_operand.hbm [shape: f32[8,256], index: 2, kind: output, shape index: {}]
  %s3 = sld [smem:[#allocation0]]
  $region26: #{tpu_custom_call.1} parent=0
    _
  %s5 = ssub.s32 1, %s3
  %s6 = scalar_select 0, %s5, %s3
  $region1: #{tpu_custom_call.1} parent=0
    #allocation2 [shape = 'u8[8192]{0}', space=vmem, size = 0x2000, scoped, tag = 'input window, operand 0, single buffered']
    #allocation3 [shape = 's32[1]{0}', space=sflag, size = 0x4, scoped, tag = 'scoped memory for tpu_custom_call.1']
    #allocation4 [shape = 's32[1]{0}', space=sflag, size = 0x4, scoped, tag = 'scoped memory for tpu_custom_call.1']
    #allocation5 [shape = 'u8[8192]{0}', space=vmem, size = 0x2000, scoped, tag = 'input window, operand 1, single buffered']
    #allocation6 [shape = 's32[1]{0}', space=sflag, size = 0x4, scoped, tag = 'scoped memory for tpu_custom_call.1']
    #allocation7 [shape = 'u8[8192]{0}', space=vmem, size = 0x2000, scoped, tag = 'output window, operand 0, single buffered']
    %7 = vsyncpa [#allocation3], 0
    %8 = vsyncpa [#allocation6], 0
    %9 = vsyncpa [#allocation4], 0
    // Predicated region
    $region2: #{tpu_custom_call.1} parent=1 // pred_check
      _
    $region3: #{tpu_custom_call.1} parent=1 // pred_check_branch
      %11 = sbr.rel (0) target = $region5
    $region4: #{tpu_custom_call.1} parent=1 // pred_region
      %13 = vsyncadd [#allocation3], 0
      %s15 = sshll.u32 %s0, 4
      %s16 = int_to_ptr.hbm [resolvable:$true] %s15
      %s17 = sshll.u32 [#allocation2], 4
      %s18 = int_to_ptr.vmem [resolvable:$true] %s17
      %20 = dma.hbm_to_vmem [thread:$0]  %s16, 256, %s18, [#allocation3]
    $region5: #{tpu_custom_call.1} parent=1 // pred_fallthru
      _
    // Predicated region
    $region6: #{tpu_custom_call.1} parent=1 // pred_check
      _
    $region7: #{tpu_custom_call.1} parent=1 // pred_check_branch
      %22 = sbr.rel (0) target = $region9
    $region8: #{tpu_custom_call.1} parent=1 // pred_region
      %24 = vsyncadd [#allocation6], 0
      %s26 = sshll.u32 %s1, 4
      %s27 = int_to_ptr.hbm [resolvable:$true] %s26
      %s28 = sshll.u32 [#allocation5], 4
      %s29 = int_to_ptr.vmem [resolvable:$true] %s28
      %31 = dma.hbm_to_vmem [thread:$0]  %s27, 256, %s29, [#allocation6]
    $region9: #{tpu_custom_call.1} parent=1 // pred_fallthru
      _
    // Predicated region
    $region10: #{tpu_custom_call.1} parent=1 // pred_check
      _
    $region11: #{tpu_custom_call.1} parent=1 // pred_check_branch
      %33 = sbr.rel (0) target = $region13
    $region12: #{tpu_custom_call.1} parent=1 // pred_region
      %35 = dma.done [#allocation3], 256
    $region13: #{tpu_custom_call.1} parent=1 // pred_fallthru
      _
    // Predicated region
    $region14: #{tpu_custom_call.1} parent=1 // pred_check
      _
    $region15: #{tpu_custom_call.1} parent=1 // pred_check_branch
      %37 = sbr.rel (0) target = $region17
    $region16: #{tpu_custom_call.1} parent=1 // pred_region
      %39 = dma.done [#allocation6], 256
    $region17: #{tpu_custom_call.1} parent=1 // pred_fallthru
      _
    %v40 = vld [vmem:[#allocation2] sm:$0xff]
    %v41 = vld [vmem:[#allocation2 + $0x8] sm:$0xff]
    %v42 = vld [vmem:[#allocation5] sm:$0xff]
    %v43 = vld [vmem:[#allocation5 + $0x8] sm:$0xff]
    %v44 = vadd.f32 %v40, %v42
    %v45 = vadd.f32 %v41, %v43
    %46 = vst [vmem:[#allocation7] sm:$0xff] %v44
    %47 = vst [vmem:[#allocation7 + $0x8] sm:$0xff] %v45
    // Predicated region
    $region18: #{tpu_custom_call.1} parent=1 // pred_check
      _
    $region19: #{tpu_custom_call.1} parent=1 // pred_check_branch
      %49 = sbr.rel (0) target = $region21
    $region20: #{tpu_custom_call.1} parent=1 // pred_region
      %51 = vsyncadd [#allocation4], 0
      %s53 = sshll.u32 [#allocation7], 4
      %s54 = int_to_ptr.vmem [resolvable:$true] %s53
      %s55 = sshll.u32 %s2, 4
      %s56 = int_to_ptr.hbm [resolvable:$true] %s55
      %58 = dma.vmem_to_hbm [thread:$0]  %s54, 256, %s56, [#allocation4]
    $region21: #{tpu_custom_call.1} parent=1 // pred_fallthru
      _
    // Predicated region
    $region22: #{tpu_custom_call.1} parent=1 // pred_check
      _
    $region23: #{tpu_custom_call.1} parent=1 // pred_check_branch
      %60 = sbr.rel (0) target = $region25
    $region24: #{tpu_custom_call.1} parent=1 // pred_region
      %62 = dma.done [#allocation4], 256
    $region25: #{tpu_custom_call.1} parent=1 // pred_fallthru
      _
    %63 = vsyncpa [#allocation3], 1
    %64 = vsyncpa [#allocation6], 1
    %65 = vsyncpa [#allocation4], 1

</llo_original>
